<compile_context>
chip_gen: v5e
topology: v5e:2x2
jax: 0.10.0
libtpu: 0.0.40
codegen_flags: <defaults>
</compile_context>

<pallas_src>
import functools

import numpy as np
import jax
import jax.numpy as jnp
from jax.experimental import pallas as pl
from jax.experimental.pallas import tpu as pltpu


def _gather_row_kernel(ids_ref, msk_ref, wpos_ref, out_ref, *, tokens_length):
    # ids_ref, msk_ref: (batch*Lt,) int32 in SMEM (scalar prefetch).
    # wpos_ref: (1, 1, d_model) f32 -- the W_pos row selected by the index_map.
    # out_ref : (1, 1, 1, d_model) f32 -- output slot for (batch b, token t).
    b = pl.program_id(0)
    t = pl.program_id(1)
    keep = (msk_ref[b * tokens_length + t] != 0).astype(jnp.float32)
    out_ref[0] = wpos_ref[...] * keep


def sinus_pos_embed(tokens, W_pos, past_kv_pos_offset=0, attention_mask=None):
    """Pallas implementation of SinusPosEmbed.forward.

    tokens: (batch, pos) int array (only its shape is used).
    W_pos : (n_ctx, d_model) float32.
    attention_mask: optional (batch, past_kv_pos_offset + pos) int array.
    Returns (batch, pos, d_model) float32.
    """
    batch, tokens_length = tokens.shape
    n_ctx, d_model = W_pos.shape
    off = int(past_kv_pos_offset)
    lt = int(tokens_length)

    # attention_mask=None is exactly the masked branch with an all-ones mask
    # (cumsum-1 == [0..L-1], nothing gets zeroed), so one kernel covers both.
    if attention_mask is None:
        attention_mask = jnp.ones((batch, tokens_length + off), dtype=jnp.int32)
    mask_i = attention_mask.astype(jnp.int32)

    # get_offset_position_ids, done in plain JAX integer math (negligible cost).
    shifted = jnp.cumsum(mask_i, axis=1) - 1
    pos_ids = jnp.maximum(shifted, 0)[:, off:off + tokens_length]
    # Safety clamp: the torch reference would index W_pos out of range if the
    # number of attended tokens exceeded n_ctx; keep ids in-bounds instead.
    pos_ids = jnp.minimum(pos_ids, n_ctx - 1)
    mask_slice = mask_i[:, off:off + tokens_length]

    # Flatten to 1D int32 so the SMEM footprint stays small (1D padding only).
    ids_flat = pos_ids.reshape(-1).astype(jnp.int32)      # (batch*Lt,)
    msk_flat = mask_slice.reshape(-1).astype(jnp.int32)   # (batch*Lt,)

    # Reshape so the last two dims of every block equal the full array dims.
    wpos3 = W_pos.reshape(n_ctx, 1, d_model)

    kernel = functools.partial(_gather_row_kernel, tokens_length=lt)

    out4 = pl.pallas_call(
        kernel,
        out_shape=jax.ShapeDtypeStruct((batch, tokens_length, 1, d_model),
                                       jnp.float32),
        grid_spec=pltpu.PrefetchScalarGridSpec(
            num_scalar_prefetch=2,
            grid=(batch, tokens_length),
            in_specs=[
                # Data-dependent gather: block size 1 along rows means the
                # block index returned by the index_map IS the row id.
                pl.BlockSpec((1, 1, d_model),
                             lambda b, t, ids, msk: (ids[b * lt + t], 0, 0)),
            ],
            out_specs=pl.BlockSpec((1, 1, 1, d_model),
                                   lambda b, t, ids, msk: (b, t, 0, 0)),
        ),
        compiler_params=pltpu.CompilerParams(
            dimension_semantics=("parallel", "parallel")),
    )(ids_flat, msk_flat, wpos3)

    return out4.reshape(batch, tokens_length, d_model)


def make_w_pos(n_ctx, d_model, n=10000):
    """Deterministic init identical to the module __init__ (numpy f64 -> f32)."""
    m = np.zeros((n_ctx, d_model))
    for k in range(n_ctx):
        for i in range(d_model // 2):
            denom = np.power(n, 2 * i / d_model)
            m[k, 2 * i] = np.sin(k / denom)
            m[k, 2 * i + 1] = np.cos(k / denom)
    return jnp.asarray(m, dtype=jnp.float32)


def ref_forward(tokens, W_pos, past_kv_pos_offset=0, attention_mask=None):
    """Pure-JAX reference mirroring the PyTorch forward."""
    batch, tokens_length = tokens.shape
    d_model = W_pos.shape[1]
    if attention_mask is None:
        pe = W_pos[past_kv_pos_offset:tokens_length + past_kv_pos_offset]
        return jnp.broadcast_to(pe[None], (batch, tokens_length, d_model))
    shifted = jnp.cumsum(attention_mask, axis=1) - 1
    pos_ids = jnp.where(shifted < 0, 0, shifted)[:, past_kv_pos_offset:]
    pe = W_pos[pos_ids]
    pad = (attention_mask == 0)[:, past_kv_pos_offset:
                                tokens_length + past_kv_pos_offset][..., None]
    return jnp.where(pad, 0.0, pe)


if __name__ == "__main__":
    key = jax.random.PRNGKey(0)
    batch, n_ctx, d_model = 2, 16, 32      # cfg.n_ctx=16, cfg.d_model=32
    tokens_length = 6
    past_kv_pos_offset = 2

    W_pos = make_w_pos(n_ctx, d_model)
    tokens = jax.random.randint(key, (batch, tokens_length), 0, 50, dtype=jnp.int32)

    # attention mask over past + current positions, with some left padding
    attention_mask = jnp.array([[0, 0, 1, 1, 1, 1, 1, 1],
                                [0, 1, 1, 1, 1, 1, 1, 1]], dtype=jnp.int32)

    out_masked = sinus_pos_embed(tokens, W_pos, past_kv_pos_offset, attention_mask)
    out_nomask = sinus_pos_embed(tokens, W_pos, 0, None)
    jax.block_until_ready((out_masked, out_nomask))

    ref_masked = ref_forward(tokens, W_pos, past_kv_pos_offset, attention_mask)
    ref_nomask = ref_forward(tokens, W_pos, 0, None)

    assert out_masked.shape == (batch, tokens_length, d_model)
    assert out_masked.dtype == jnp.float32
    assert np.allclose(np.asarray(out_masked), np.asarray(ref_masked), atol=1e-5)
    assert np.allclose(np.asarray(out_nomask), np.asarray(ref_nomask), atol=1e-5)

    print("KERNEL_OK")
</pallas_src>

<mosaic_0001>
module attributes {stable_mosaic.version = 11 : i64} {
  func.func @_gather_row_kernel(%arg0: i32, %arg1: i32, %arg2: memref<12xi32, #tpu.memory_space<smem>>, %arg3: memref<12xi32, #tpu.memory_space<smem>>, %arg4: memref<1x1x32xf32, #tpu.memory_space<vmem>>, %arg5: memref<1x1x1x32xf32, #tpu.memory_space<vmem>>) attributes {dimension_semantics = [#tpu.dimension_semantics<parallel>, #tpu.dimension_semantics<parallel>], iteration_bounds = array<i64: 2, 6>, scalar_prefetch = 2 : i64, scratch_operands = 0 : i64, tpu.core_type = #tpu.core_type<tc>, window_params = [{transform_indices = @transform_0, window_bounds = array<i64: 1, 1, 32>}, {transform_indices = @transform_1, window_bounds = array<i64: 1, 1, 1, 32>}]} {
    %c6_i32 = arith.constant 6 : i32
    %0 = arith.muli %arg0, %c6_i32 : i32
    %1 = arith.addi %0, %arg1 : i32
    %2 = arith.index_cast %1 : i32 to index
    %3 = memref.load %arg3[%2] : memref<12xi32, #tpu.memory_space<smem>>
    %c0_i32 = arith.constant 0 : i32
    %4 = arith.cmpi ne, %3, %c0_i32 : i32
    %5 = arith.extui %4 : i1 to i32
    %6 = arith.sitofp %5 : i32 to f32
    %c0 = arith.constant 0 : index
    %c0_0 = arith.constant 0 : index
    %c0_1 = arith.constant 0 : index
    %7 = vector.load %arg4[%c0, %c0_0, %c0_1] : memref<1x1x32xf32, #tpu.memory_space<vmem>>, vector<1x1x32xf32>
    %8 = vector.broadcast %6 : f32 to vector<1x1x32xf32>
    %9 = arith.mulf %7, %8 : vector<1x1x32xf32>
    %c0_2 = arith.constant 0 : index
    %c0_3 = arith.constant 0 : index
    %c0_4 = arith.constant 0 : index
    %c0_5 = arith.constant 0 : index
    %10 = vector.load %arg5[%c0_2, %c0_3, %c0_4, %c0_5] : memref<1x1x1x32xf32, #tpu.memory_space<vmem>>, vector<1x1x1x32xf32>
    %11 = vector.shape_cast %10 : vector<1x1x1x32xf32> to vector<1x1x32xf32>
    %12 = vector.shape_cast %9 : vector<1x1x32xf32> to vector<1x1x1x32xf32>
    tpu.vector_store %arg5[%c0_2, %c0_3, %c0_4, %c0_5], %12 {strides = array<i32>} : memref<1x1x1x32xf32, #tpu.memory_space<vmem>>, vector<1x1x1x32xf32>,
    return
  }
  func.func @transform_0(%arg0: i32, %arg1: i32, %arg2: memref<12xi32, #tpu.memory_space<smem>>, %arg3: memref<12xi32, #tpu.memory_space<smem>>) -> (i32, i32, i32) {
    %c6_i32 = arith.constant 6 : i32
    %0 = arith.muli %arg0, %c6_i32 : i32
    %1 = arith.addi %0, %arg1 : i32
    %2 = arith.index_cast %1 : i32 to index
    %3 = memref.load %arg2[%2] : memref<12xi32, #tpu.memory_space<smem>>
    %c0_i32 = arith.constant 0 : i32
    %c0_i32_0 = arith.constant 0 : i32
    %c0_i32_1 = arith.constant 0 : i32
    return %3, %c0_i32, %c0_i32_0 : i32, i32, i32
  }
  func.func @transform_1(%arg0: i32, %arg1: i32, %arg2: memref<12xi32, #tpu.memory_space<smem>>, %arg3: memref<12xi32, #tpu.memory_space<smem>>) -> (i32, i32, i32, i32) {
    %c0_i32 = arith.constant 0 : i32
    %c0_i32_0 = arith.constant 0 : i32
    %c0_i32_1 = arith.constant 0 : i32
    return %arg0, %arg1, %c0_i32, %c0_i32_0 : i32, i32, i32, i32
  }
}

</mosaic_0001>

<llo_original>
// kernel: tpu_custom_call.1
$region0: #{tpu_custom_call.1}
  #allocation0 [shape = 'u32[]', space=smem, size = 0x4, offset = 0x4, fixed_abs, tag = 'smem constant byte address 0x4 - core index']
  #allocation1 [shape = 'u32[72,128]{1,0:T(1,128)}', space=vmem, size = 0x9000, scoped, tag = 'internal scratch']
  #allocation2 [shape = 's32[1]{0}', space=sflag, size = 0x4, scoped, tag = 'scoped memory for tpu_custom_call.1']
  #allocation3 [shape = 'u8[512]{0}', space=smem, size = 0x200, scoped, tag = 'prefetched SMEM operand 0']
  #allocation4 [shape = 'u8[512]{0}', space=smem, size = 0x200, scoped, tag = 'prefetched SMEM operand 1']
  %s0 = inlined_call_operand.hbm [shape: s32[12], index: 0, kind: input, shape index: {}]
  %s1 = inlined_call_operand.hbm [shape: s32[12], index: 1, kind: input, shape index: {}]
  %s2 = inlined_call_operand.hbm [shape: f32[16,1,32], index: 2, kind: input, shape index: {}]
  %s3 = inlined_call_operand.hbm [shape: f32[2,6,1,32], index: 3, kind: output, shape index: {}]
  %s4 = sld [smem:[#allocation0]]
  $region41: #{tpu_custom_call.1} parent=0
    _
  %s6 = ssub.s32 1, %s4
  %s7 = scalar_select 0, %s6, %s4
  %s9 = sshll.u32 %s0, 4
  %s10 = int_to_ptr.hbm [resolvable:$true] %s9
  %12 = dma.hbm_to_smem %s10, 16, [#allocation3], [#allocation2]
  %s14 = sshll.u32 %s1, 4
  %s15 = int_to_ptr.hbm [resolvable:$true] %s14
  %17 = dma.hbm_to_smem %s15, 16, [#allocation4], [#allocation2]
  %19 = dma.done [#allocation2], 32
  %20 = sfence
  $region1: #{tpu_custom_call.1} parent=0
    #allocation5 [shape = 'u8[1024]{0}', space=vmem, size = 0x400, scoped, tag = 'input window, operand 2']
    #allocation6 [shape = 's32[2]{0}', space=sflag, size = 0x8, scoped, tag = 'scoped memory for tpu_custom_call.1']
    #allocation7 [shape = 's32[2]{0}', space=sflag, size = 0x8, scoped, tag = 'scoped memory for tpu_custom_call.1']
    #allocation8 [shape = 'u8[1024]{0}', space=vmem, size = 0x400, scoped, tag = 'output window, operand 0']
    %21 = vsyncpa [#allocation6], 0
    %s22 = scalar_lea.sflag [#allocation6], 1
    %23 = vsyncpa %s22, 0
    %24 = vsyncpa [#allocation7], 0
    %s25 = scalar_lea.sflag [#allocation7], 1
    %26 = vsyncpa %s25, 0
    loop: start=0, step=1, limit=14
    $region2: #{tpu_custom_call.1} parent=1 // loop_pre_header
      _
    $region3: #{tpu_custom_call.1} parent=1 // loop_header
      %s28 = sphi 0, %s32
      %p29 = scmp.ge.s32.totalorder %s28, 14
      %s35 = sphi 0, %s47
      %s36 = sphi 0, %s43
      %s37 = sphi 0, %s35
      %s38 = sphi 0, %s36
      %s39 = sphi 0, %s37
      %s40 = sphi 0, %s38
      %s56 = sphi 0, %s58
      %s59 = sphi 0, %s56
      %s60 = sphi 0, %s59
      %s76 = sphi 0, %s60
      %s84 = sphi 0, %s86
      %s87 = sphi 0, %s84
      %s88 = sphi 0, %s87
      %s104 = sphi 0, %s88
    $region4: #{tpu_custom_call.1} parent=1 // loop_header_branch
      %31 = sbr.rel (%p29) target = $region8
    $region5: #{tpu_custom_call.1} parent=1 // loop_body
      %s33 = ssub.s32 %s28, 1
      %s34 = ssub.s32 %s28, 2
      %s41 = sadd.s32 1, %s36
      %p42 = scmp.ge.s32.totalorder %s41, 6
      %s43 = scalar_select %p42, 0, %s41
      %s44 = sadd.s32 1, %s35
      %s45 = scalar_select %p42, %s44, %s35
      %p46 = scmp.ge.s32.totalorder %s45, 2
      %s47 = scalar_select %p46, 0, %s45
      %s48 = smul.u32 %s35, 6
      %s49 = sadd.s32 %s48, %s36
      %s50 = sld [smem:[#allocation3 + %s49]]
      %s51 = smul.u32 %s47, 6
      %s52 = sadd.s32 %s51, %s43
      %s53 = sld [smem:[#allocation3 + %s52]]
      %s54 = ssub.s32 %s50, %s53
      %p55 = scmp.eq.s32.totalorder %s54, 0
      %s57 = sadd.s32 %s56, 1
      %s58 = scalar_select %p55, %s56, %s57
      %p61 = pneg %p55
      %p62 = scmp.eq.s32.totalorder %s28, 11
      %p63 = por %p61, %p62
      %p64 = scmp.ne.s32.totalorder %s56, %s59
      %p65 = scmp.eq.s32.totalorder %s28, 0
      %p66 = por %p64, %p65
      %p67 = scmp.ne.s32.totalorder %s56, %s59
      %p68 = scmp.eq.s32.totalorder %s33, 11
      %p69 = por %p67, %p68
      %p70 = scmp.ne.s32.totalorder %s59, %s60
      %p71 = scmp.eq.s32.totalorder %s33, 0
      %p72 = por %p70, %p71
      %p73 = scmp.ne.s32.totalorder %s59, %s60
      %p74 = scmp.eq.s32.totalorder %s34, 11
      %p75 = por %p73, %p74
      %p77 = scmp.ne.s32.totalorder %s60, %s76
      %p78 = scmp.eq.s32.totalorder %s34, 0
      %p79 = por %p77, %p78
      %s80 = ssub.s32 %s35, %s47
      %s81 = ssub.s32 %s36, %s43
      %s82 = sor.u32 %s80, %s81
      %p83 = scmp.eq.s32.totalorder %s82, 0
      %s85 = sadd.s32 %s84, 1
      %s86 = scalar_select %p83, %s84, %s85
      %p89 = pneg %p83
      %p90 = scmp.eq.s32.totalorder %s28, 11
      %p91 = por %p89, %p90
      %p92 = scmp.ne.s32.totalorder %s84, %s87
      %p93 = scmp.eq.s32.totalorder %s28, 0
      %p94 = por %p92, %p93
      %p95 = scmp.ne.s32.totalorder %s84, %s87
      %p96 = scmp.eq.s32.totalorder %s33, 11
      %p97 = por %p95, %p96
      %p98 = scmp.ne.s32.totalorder %s87, %s88
      %p99 = scmp.eq.s32.totalorder %s33, 0
      %p100 = por %p98, %p99
      %p101 = scmp.ne.s32.totalorder %s87, %s88
      %p102 = scmp.eq.s32.totalorder %s34, 11
      %p103 = por %p101, %p102
      %p105 = scmp.ne.s32.totalorder %s88, %s104
      %p106 = scmp.eq.s32.totalorder %s34, 0
      %p107 = por %p105, %p106
      %p108 = scmp.le.s32.totalorder 1, %s28
      %p109 = scmp.lt.s32.totalorder %s28, 13
      %p110 = pnand %p108, %p109
      %p111 = pneg %p110
      // Predicated region
      $region9: #{tpu_custom_call.1} parent=5 // pred_check
        _
      $region10: #{tpu_custom_call.1} parent=5 // pred_check_branch
        %113 = sbr.rel (%p110) target = $region12
      $region11: #{tpu_custom_call.1} parent=5 // pred_region
        %s114 = ssub.s32 %s28, 1
      $region12: #{tpu_custom_call.1} parent=5 // pred_fallthru
        _
      %p115 = scmp.lt.s32.totalorder %s28, 12
      // Predicated region
      $region13: #{tpu_custom_call.1} parent=5 // pred_check
        %p116 = pneg %p115
      $region14: #{tpu_custom_call.1} parent=5 // pred_check_branch
        %118 = sbr.rel (%p116) target = $region16
      $region15: #{tpu_custom_call.1} parent=5 // pred_region
        // Predicated region
        $region17: #{tpu_custom_call.1} parent=15 // pred_check
          %p119 = pneg %p66
        $region18: #{tpu_custom_call.1} parent=15 // pred_check_branch
          %121 = sbr.rel (%p119) target = $region20
        $region19: #{tpu_custom_call.1} parent=15 // pred_region
          %s122 = sand.u32 %s56, 1
          %s123 = scalar_lea.sflag [#allocation6], %s122
          %s124 = sand.u32 %s56, 1
          %s125 = scalar_lea.vmem [#allocation5], %s124
          %s126 = smul.u32 %s35, 6
          %s127 = sadd.s32 %s126, %s36
          %s128 = sld [smem:[#allocation3 + %s127]]
          %130 = vsyncadd %s123, 0
          %s131 = scalar_lea.hbm %s2, %s128
          %s133 = sshll.u32 %s131, 4
          %s134 = int_to_ptr.hbm [resolvable:$true] %s133
          %s135 = sshll.u32 %s125, 4
          %s136 = int_to_ptr.vmem [resolvable:$true] %s135
          %138 = dma.hbm_to_vmem [thread:$0]  %s134, 16, %s136, %s123
        $region20: #{tpu_custom_call.1} parent=15 // pred_fallthru
          _
      $region16: #{tpu_custom_call.1} parent=5 // pred_fallthru
        _
      %p139 = scmp.le.s32.totalorder 1, %s28
      %p140 = scmp.lt.s32.totalorder %s28, 13
      %p141 = pnand %p139, %p140
      %p142 = pneg %p141
      // Predicated region
      $region21: #{tpu_custom_call.1} parent=5 // pred_check
        _
      $region22: #{tpu_custom_call.1} parent=5 // pred_check_branch
        %144 = sbr.rel (%p141) target = $region24
      $region23: #{tpu_custom_call.1} parent=5 // pred_region
        %s145 = ssub.s32 %s28, 1
        %s146 = sand.u32 %s59, 1
        %s147 = scalar_lea.sflag [#allocation6], %s146
        %s148 = sand.u32 %s59, 1
        %s149 = scalar_lea.vmem [#allocation5], %s148
        // Predicated region
        $region25: #{tpu_custom_call.1} parent=23 // pred_check
          %p150 = pneg %p72
        $region26: #{tpu_custom_call.1} parent=23 // pred_check_branch
          %152 = sbr.rel (%p150) target = $region28
        $region27: #{tpu_custom_call.1} parent=23 // pred_region
          %154 = dma.done %s147, 16
        $region28: #{tpu_custom_call.1} parent=23 // pred_fallthru
          _
        %s155 = sand.u32 %s59, 1
        %s156 = scalar_lea.sflag [#allocation6], %s155
        %s157 = sand.u32 %s59, 1
        %s158 = scalar_lea.vmem [#allocation5], %s157
        %p159 = pneg %p72
        %p160 = pneg %p69
        %p161 = pneg %p100
        %p162 = pneg %p97
        %s163 = sand.u32 %s87, 1
        %s164 = scalar_lea.sflag [#allocation7], %s163
        %s165 = sand.u32 %s87, 1
        %s166 = scalar_lea.vmem [#allocation8], %s165
        %s167 = smul.u32 %s37, 6
        %s168 = sadd.s32 %s167, %s38
        %s169 = sld [smem:[#allocation3 + %s168]]
        %s170 = smul.u32 %s37, 6
        %s171 = sadd.s32 %s170, %s38
        %s172 = sld [smem:[#allocation4 + %s171]]
        %p173 = scmp.ne.s32.totalorder %s172, 0
        %s174 = scalar_select %p173, 1, 0
        %s175 = scvt.s32.f32 %s174
        %v176 = vld [vmem:[%s149] sm:$0x1]
        %v177 = vstv %s175
        %v178 = vmul.f32 %v176, %v177
        %vm179 = vcmask 253952
        %180 = vst.msk [vmem:[%s166] sm:$0x1] %vm179, %v178
        %s181 = sand.u32 %s87, 1
        %s182 = scalar_lea.sflag [#allocation7], %s181
        %s183 = sand.u32 %s87, 1
        %s184 = scalar_lea.vmem [#allocation8], %s183
        // Predicated region
        $region29: #{tpu_custom_call.1} parent=23 // pred_check
          %p185 = pneg %p97
        $region30: #{tpu_custom_call.1} parent=23 // pred_check_branch
          %187 = sbr.rel (%p185) target = $region32
        $region31: #{tpu_custom_call.1} parent=23 // pred_region
          %189 = vsyncadd %s182, 0
          %s190 = smul.addr %s37, 6
          %s191 = sadd.s32 %s38, %s190
          %s192 = scalar_lea.hbm %s3, %s191
          %s194 = sshll.u32 %s184, 4
          %s195 = int_to_ptr.vmem [resolvable:$true] %s194
          %s196 = sshll.u32 %s192, 4
          %s197 = int_to_ptr.hbm [resolvable:$true] %s196
          %199 = dma.vmem_to_hbm [thread:$0]  %s195, 16, %s197, %s182
        $region32: #{tpu_custom_call.1} parent=23 // pred_fallthru
          _
      $region24: #{tpu_custom_call.1} parent=5 // pred_fallthru
        _
      %p200 = scmp.le.s32.totalorder 2, %s28
      // Predicated region
      $region33: #{tpu_custom_call.1} parent=5 // pred_check
        %p201 = pneg %p200
      $region34: #{tpu_custom_call.1} parent=5 // pred_check_branch
        %203 = sbr.rel (%p201) target = $region36
      $region35: #{tpu_custom_call.1} parent=5 // pred_region
        %s204 = ssub.s32 %s28, 2
        // Predicated region
        $region37: #{tpu_custom_call.1} parent=35 // pred_check
          %p205 = pneg %p103
        $region38: #{tpu_custom_call.1} parent=35 // pred_check_branch
          %207 = sbr.rel (%p205) target = $region40
        $region39: #{tpu_custom_call.1} parent=35 // pred_region
          %s208 = sand.u32 %s88, 1
          %s209 = scalar_lea.sflag [#allocation7], %s208
          %s210 = sand.u32 %s88, 1
          %s211 = scalar_lea.vmem [#allocation8], %s210
          %213 = dma.done %s209, 16
        $region40: #{tpu_custom_call.1} parent=35 // pred_fallthru
          _
      $region36: #{tpu_custom_call.1} parent=5 // pred_fallthru
        _
    $region6: #{tpu_custom_call.1} parent=1 // loop_footer
      %s32 = sadd.s32 1, %s28
    $region7: #{tpu_custom_call.1} parent=1 // loop_footer_branch
      %27 = sbr.rel target = $region3
    $region8: #{tpu_custom_call.1} parent=1 // loop_exit
      _
    %214 = vsyncpa [#allocation6], 1
    %s215 = scalar_lea.sflag [#allocation6], 1
    %216 = vsyncpa %s215, 1
    %217 = vsyncpa [#allocation7], 1
    %s218 = scalar_lea.sflag [#allocation7], 1
    %219 = vsyncpa %s218, 1

</llo_original>
